<compile_context>
chip_gen: v5e
topology: v5e:2x2
jax: 0.10.0
libtpu: 0.0.40
codegen_flags: <defaults>
</compile_context>

<pallas_src>
import functools

import jax
import jax.numpy as jnp
from jax.experimental import pallas as pl
from jax.experimental.pallas import tpu as pltpu


# ---------------------------------------------------------------------------
# Kernel
# ---------------------------------------------------------------------------

def _attn_scores_softmax_kernel(w_ref, hs_ref, out_ref, *, mxu_reduce, approx_recip):
    """Grid = (batch tiles [parallel], S tiles [arbitrary, innermost]).

    w_ref   : (Bt, H) per-batch query (dot/general) or (1, H) shared folded
              concat vector, in the streaming dtype.
    hs_ref  : (St, Bt, H) encoder states in the *native time-major layout*
              (no host transpose), streaming dtype.
    out_ref : (S, Bt) f32.  Its block index ignores the S-grid axis, so the
              block stays resident in VMEM across all S steps of a batch tile;
              raw scores are written per step and the softmax is applied in
              place on the last step (one HBM writeback per batch tile).
    """
    j = pl.program_id(1)                       # S-tile index
    hs = hs_ref[...]                           # (St, Bt, H) streaming dtype
    st, bt, h = hs.shape
    w = w_ref[...]                             # (Bt|1, H)   streaming dtype

    # Per-(s, b) contraction over H.  The product stays in the streaming dtype
    # (no full-tile f32 upcast copy).  For the shared-w concat path the
    # broadcast multiply is cheap VPU filler well under the HBM roofline.
    prod = hs * w[None]                        # (St, Bt, H)

    if mxu_reduce:
        # Route the H-reduction through the otherwise-idle MXU instead of a
        # cross-lane XLU reduce: (St*Bt, H) @ (H, 1) with f32 accumulation.
        ones = jnp.ones((h, 1), dtype=prod.dtype)
        col = jnp.dot(prod.reshape(st * bt, h), ones,
                      preferred_element_type=jnp.float32)      # (St*Bt, 1)
        scores = col.reshape(st, bt)                            # (St, Bt) f32
    else:
        # Precise / always-lowering fallback: lane reduce, f32 accumulation.
        scores = jnp.sum(prod, axis=-1, dtype=jnp.float32)      # (St, Bt)

    out_ref[pl.ds(pl.multiple_of(j * st, st), st), :] = scores

    @pl.when(j == pl.num_programs(1) - 1)
    def _finalize():
        sc = out_ref[...]                       # (S, Bt) resident raw scores
        m = jnp.max(sc, axis=0, keepdims=True)
        e = jnp.exp(sc - m)
        denom = jnp.sum(e, axis=0, keepdims=True)
        out_ref[...] = e * pl.reciprocal(denom, approx=approx_recip)


# ---------------------------------------------------------------------------
# Tiling / pallas_call wrapper
# ---------------------------------------------------------------------------

@functools.lru_cache(maxsize=None)
def _vmem_budget():
    """Per-generation VMEM limit for the pallas_call and per-hs-tile byte target."""
    try:
        cap = int(pltpu.get_tpu_info().vmem_capacity_bytes)   # 128 MiB v5e/v6e, 64 MiB v7x
    except Exception:
        cap = 64 << 20                                        # conservative (v7x per-TC)
    limit = min(cap // 2, 96 << 20)        # 64 MiB on v5e/v6e, 32 MiB on v7x
    # ~12.8 MiB (v5e/v6e) / ~6.4 MiB (v7x) per hs tile: 2x double-buffered hs
    # + ~1x in-kernel temporaries + resident (S, Bt) output blocks + slack.
    budget = max(2 << 20, limit // 5)
    return limit, budget


@functools.lru_cache(maxsize=None)
def _choose_tiles(B, S, H, itemsize, budget):
    """Pick (Bt, St).

    Constraints: Bt | B and (Bt == B or Bt % 128 == 0) so the (S, Bt) output
    block and the (St, Bt, H) input block satisfy the (8, 128) rule in the
    native layouts; St | S so every score row is written before the softmax
    finalize reads the resident block.
    Preference among configs that fit the byte budget: >=4 grid steps
    (software pipelining), then >=2 batch tiles (megacore split), then the
    largest tile (amortize per-step overhead).
    """
    total = B * S * H * itemsize + S * B * 4
    if total <= (2 << 20):                 # tiny problem: single block
        return B, S
    bt_cands = sorted({B} | {d for d in range(128, B, 128) if B % d == 0},
                      reverse=True)
    st_cands = sorted({d for d in range(1, S + 1) if S % d == 0}, reverse=True)
    feasible = []
    for bt in bt_cands:
        if S * bt * 4 > budget:            # resident (S, Bt) f32 output block
            continue
        for st in st_cands:
            tile = st * bt * H * itemsize
            if tile > budget:
                continue
            steps_b, steps_s = B // bt, S // st
            steps = steps_b * steps_s
            feasible.append((min(steps, 4), min(steps_b, 2), tile, bt, st))
    if not feasible:
        # TODO(synk): true online-softmax over S would remove the resident
        # (S, Bt) block requirement for extremely long sequences.
        return min(bt_cands), 1            # smallest block; caller bumps vmem limit
    feasible.sort()
    _, _, _, bt, st = feasible[-1]
    return bt, st


def _attention_scores_softmax(w, hs, *, mxu_reduce, approx_recip, tile_override=None):
    """w: (B, H) per-batch query or (1, H) shared vector; hs: (S, B, H) native
    time-major encoder states.  Returns (S, B) f32 softmax-over-S probabilities."""
    S, B, H = hs.shape
    itemsize = jnp.dtype(hs.dtype).itemsize
    limit, budget = _vmem_budget()
    if tile_override is not None:
        Bt, St = tile_override
    else:
        Bt, St = _choose_tiles(B, S, H, itemsize, budget)
    assert B % Bt == 0 and S % St == 0, (B, Bt, S, St)
    assert Bt == B or Bt % 128 == 0, (B, Bt)

    grid = (B // Bt, S // St)
    shared_w = (w.shape[0] == 1)
    w_spec = (pl.BlockSpec((1, H), lambda i, j: (0, 0)) if shared_w
              else pl.BlockSpec((Bt, H), lambda i, j: (i, 0)))
    # TODO(synk): if profiling on v7x still shows exposed DMA after the
    # footprint trims, bump this spec to pipeline_mode=pl.Buffered(3).
    hs_spec = pl.BlockSpec((St, Bt, H), lambda i, j: (j, i, 0))
    out_spec = pl.BlockSpec((S, Bt), lambda i, j: (0, i))

    tile_bytes = St * Bt * H * itemsize
    out_bytes = S * Bt * 4
    vmem_limit = max(limit, 3 * tile_bytes + 2 * out_bytes + (4 << 20))

    kernel = functools.partial(_attn_scores_softmax_kernel,
                               mxu_reduce=mxu_reduce, approx_recip=approx_recip)
    return pl.pallas_call(
        kernel,
        out_shape=jax.ShapeDtypeStruct((S, B), jnp.float32),
        grid=grid,
        in_specs=[w_spec, hs_spec],
        out_specs=out_spec,
        compiler_params=pltpu.CompilerParams(
            dimension_semantics=("parallel", "arbitrary"),  # batch rows independent; S revisits out
            vmem_limit_bytes=int(vmem_limit)),
    )(w, hs)


# ---------------------------------------------------------------------------
# Module wrapper
# ---------------------------------------------------------------------------

class AttnPallas:
    """Mirror of the PyTorch Attn module with deterministic parameter init."""

    def __init__(self, method, hidden_size, key, *,
                 transfer_dtype=jnp.bfloat16, tile_override=None):
        assert method in ['dot', 'general', 'concat']
        self.method = method
        self.hidden_size = hidden_size
        self.transfer_dtype = jnp.dtype(transfer_dtype)
        self.tile_override = tile_override
        low_precision = self.transfer_dtype != jnp.dtype(jnp.float32)
        # EUP approximate reciprocal + MXU H-reduction only on the low-precision
        # stream; the f32 path stays bit-accurate for reference checking.
        self._approx = low_precision
        self._reduce_candidates = (True, False) if low_precision else (False,)
        self._fwd = None
        H = hidden_size

        if method == 'general':
            # The reference 'general' branch computes attn(hs) and discards it,
            # so these weights never influence the output (kept for parity).
            k1, k2 = jax.random.split(key)
            bound = 1.0 / (H ** 0.5)
            self.attn_w = jax.random.uniform(k1, (H, H), jnp.float32, -bound, bound)
            self.attn_b = jax.random.uniform(k2, (H,), jnp.float32, -bound, bound)
        elif method == 'concat':
            k1, k2, k3 = jax.random.split(key, 3)
            bound = 1.0 / ((2 * H) ** 0.5)
            self.attn_w = jax.random.uniform(k1, (H, 2 * H), jnp.float32, -bound, bound)
            self.attn_b = jax.random.uniform(k2, (H,), jnp.float32, -bound, bound)
            self.v = jax.random.normal(k3, (H,), jnp.float32)
            # Fold v into the hs-half of the Linear (no nonlinearity in between).
            # The ht-half and the bias are constant in s => cancel in softmax.
            self._u_s = (self.v @ self.attn_w[:, H:]).reshape(1, H)   # (1, H)

    def __call__(self, hidden, encoder_outputs):
        if self._fwd is not None:
            return self._fwd(hidden, encoder_outputs)
        cands = self._reduce_candidates
        for idx, mxu in enumerate(cands):
            fn = jax.jit(functools.partial(self._forward, mxu_reduce=mxu))
            if idx == len(cands) - 1:
                out = fn(hidden, encoder_outputs)   # last candidate: surface errors
            else:
                try:
                    out = jax.block_until_ready(fn(hidden, encoder_outputs))
                except Exception:
                    continue                        # e.g. MXU matvec fails to lower
            self._fwd = fn
            return out

    def _forward(self, hidden, encoder_outputs, *, mxu_reduce):
        # hidden: (1, B, H), encoder_outputs: (S, B, H)  (PyTorch time-major).
        # The dominant tensor is streamed in its *native* layout -- no host
        # transpose pass over HBM -- and (by default) as bf16.
        ht = hidden[0]                                            # (B, H), tiny
        hs = encoder_outputs.astype(self.transfer_dtype)          # (S, B, H)
        if self.method in ('dot', 'general'):
            w = ht.astype(self.transfer_dtype)                    # (B, H) per-batch query
        else:  # 'concat' with v folded; softmax-constant terms dropped
            w = self._u_s.astype(self.transfer_dtype)             # (1, H) shared
        probs_sb = _attention_scores_softmax(
            w, hs, mxu_reduce=mxu_reduce, approx_recip=self._approx,
            tile_override=self.tile_override)                     # (S, B) f32
        # Only the tiny (S, B) result is transposed (H x smaller than hs).
        return jnp.transpose(probs_sb)[:, None, :]                # (B, 1, S)


# ---------------------------------------------------------------------------
# Plain-JAX reference (transcription of the PyTorch forward) + self-check
# ---------------------------------------------------------------------------

def _reference(method, module, hidden, encoder_outputs):
    ht, hs = hidden, encoder_outputs                               # (1,B,H), (S,B,H)
    if method in ('dot', 'general'):
        scores = jnp.sum(ht * hs, axis=2)                          # (S, B)
    else:
        cat = jnp.concatenate([jnp.broadcast_to(ht, hs.shape), hs], axis=2)
        hs_ = cat @ module.attn_w.T + module.attn_b
        scores = jnp.sum(module.v * hs_, axis=2)                   # (S, B)
    scores = jnp.transpose(scores, (1, 0))[:, None, :]             # (B, 1, S)
    return jax.nn.softmax(scores, axis=2)


if __name__ == "__main__":
    root = jax.random.PRNGKey(0)
    k_param, k_data = jax.random.split(root)

    def run_case(cid, method, B, S, H, *, transfer_dtype, tile_override, atol):
        kh, ke = jax.random.split(jax.random.fold_in(k_data, cid))
        hidden = jax.random.normal(kh, (1, B, H), jnp.float32)
        enc = jax.random.normal(ke, (S, B, H), jnp.float32)
        attn = AttnPallas(method, H, jax.random.fold_in(k_param, cid),
                          transfer_dtype=transfer_dtype, tile_override=tile_override)
        out = jax.block_until_ready(attn(hidden, enc))
        ref = _reference(method, attn, hidden, enc)
        assert out.shape == (B, 1, S), (method, out.shape)
        return bool(jnp.allclose(out, ref, atol=atol, rtol=atol))

    ok = True
    f32, bf16 = jnp.float32, jnp.bfloat16

    # f32 stream: bit-accurate path, tight tolerance.
    ok &= run_case(0, 'dot',     2, 8, 32, transfer_dtype=f32, tile_override=None, atol=1e-5)
    ok &= run_case(1, 'general', 2, 8, 32, transfer_dtype=f32, tile_override=None, atol=1e-5)
    ok &= run_case(2, 'concat',  2, 8, 32, transfer_dtype=f32, tile_override=None, atol=1e-5)
    # Multi-S-step resident-output path, still exact.
    ok &= run_case(3, 'dot',     2, 64, 32, transfer_dtype=f32, tile_override=(2, 16), atol=1e-5)
    # bf16 stream (default): MXU reduce (or auto-fallback); coarse sanity tolerance,
    # the tight correctness check is the f32 path above.
    ok &= run_case(4, 'dot',     2, 8, 32, transfer_dtype=bf16, tile_override=None, atol=1e-1)
    ok &= run_case(5, 'concat',  2, 64, 32, transfer_dtype=bf16, tile_override=(2, 16), atol=1e-1)
    # Batch-tiled (Bt=128, per-batch query indexing) + S-tiled grid.
    ok &= run_case(6, 'dot',   256, 32, 32, transfer_dtype=bf16, tile_override=(128, 16), atol=1e-1)

    if ok:
        print("KERNEL_OK")
    else:
        raise SystemExit("result mismatch vs reference")
</pallas_src>

<mosaic_0001>
module attributes {stable_mosaic.version = 11 : i64} {
  func.func @_attn_scores_softmax_kernel(%arg0: i32, %arg1: i32, %arg2: memref<2x32xf32, #tpu.memory_space<vmem>>, %arg3: memref<8x2x32xf32, #tpu.memory_space<vmem>>, %arg4: memref<8x2xf32, #tpu.memory_space<vmem>>) attributes {dimension_semantics = [#tpu.dimension_semantics<parallel>, #tpu.dimension_semantics<arbitrary>], iteration_bounds = array<i64: 1, 1>, scalar_prefetch = 0 : i64, scratch_operands = 0 : i64, tpu.core_type = #tpu.core_type<tc>, window_params = [{transform_indices = @transform_0, window_bounds = array<i64: 2, 32>}, {transform_indices = @transform_1, window_bounds = array<i64: 8, 2, 32>}, {transform_indices = @transform_2, window_bounds = array<i64: 8, 2>}]} {
    %c0 = arith.constant 0 : index
    %c0_0 = arith.constant 0 : index
    %c0_1 = arith.constant 0 : index
    %0 = vector.load %arg3[%c0, %c0_0, %c0_1] : memref<8x2x32xf32, #tpu.memory_space<vmem>>, vector<8x2x32xf32>
    %c0_2 = arith.constant 0 : index
    %c0_3 = arith.constant 0 : index
    %1 = vector.load %arg2[%c0_2, %c0_3] : memref<2x32xf32, #tpu.memory_space<vmem>>, vector<2x32xf32>
    %2 = vector.shape_cast %1 : vector<2x32xf32> to vector<1x2x32xf32>
    %3 = vector.broadcast %2 : vector<1x2x32xf32> to vector<8x2x32xf32>
    %4 = arith.mulf %0, %3 : vector<8x2x32xf32>
    %cst = arith.constant dense<0.000000e+00> : vector<8x2xf32>
    %5 = vector.multi_reduction <add>, %4, %cst [2] : vector<8x2x32xf32> to vector<8x2xf32>
    %c8_i32 = arith.constant 8 : i32
    %6 = arith.muli %arg1, %c8_i32 : i32
    %7 = tpu.assume_multiple %6, 8 : i32
    %8 = arith.index_cast %7 : i32 to index
    %c0_4 = arith.constant 0 : index
    %9 = vector.load %arg4[%8, %c0_4] : memref<8x2xf32, #tpu.memory_space<vmem>>, vector<8x2xf32>
    tpu.vector_store %arg4[%8, %c0_4], %5 {strides = array<i32>} : memref<8x2xf32, #tpu.memory_space<vmem>>, vector<8x2xf32>,
    %c0_i32 = arith.constant 0 : i32
    %10 = arith.cmpi eq, %arg1, %c0_i32 : i32
    %11 = arith.extui %10 : i1 to i32
    %c0_i32_5 = arith.constant 0 : i32
    %12 = arith.cmpi ne, %11, %c0_i32_5 : i32
    scf.if %12 {
      %c0_6 = arith.constant 0 : index
      %c0_7 = arith.constant 0 : index
      %13 = vector.load %arg4[%c0_6, %c0_7] : memref<8x2xf32, #tpu.memory_space<vmem>>, vector<8x2xf32>
      %cst_8 = arith.constant dense<0xFF800000> : vector<2xf32>
      %14 = vector.multi_reduction <maximumf>, %13, %cst_8 [0] : vector<8x2xf32> to vector<2xf32>
      %15 = vector.shape_cast %14 : vector<2xf32> to vector<1x2xf32>
      %16 = vector.broadcast %15 : vector<1x2xf32> to vector<8x2xf32>
      %17 = arith.subf %13, %16 : vector<8x2xf32>
      %18 = math.exp %17 : vector<8x2xf32>
      %cst_9 = arith.constant dense<0.000000e+00> : vector<2xf32>
      %19 = vector.multi_reduction <add>, %18, %cst_9 [0] : vector<8x2xf32> to vector<2xf32>
      %20 = vector.shape_cast %19 : vector<2xf32> to vector<1x2xf32>
      %21 = tpu.reciprocal %20 : vector<1x2xf32> -> vector<1x2xf32>
      %22 = vector.broadcast %21 : vector<1x2xf32> to vector<8x2xf32>
      %23 = arith.mulf %18, %22 : vector<8x2xf32>
      %c0_10 = arith.constant 0 : index
      %c0_11 = arith.constant 0 : index
      %24 = vector.load %arg4[%c0_10, %c0_11] : memref<8x2xf32, #tpu.memory_space<vmem>>, vector<8x2xf32>
      tpu.vector_store %arg4[%c0_10, %c0_11], %23 {strides = array<i32>} : memref<8x2xf32, #tpu.memory_space<vmem>>, vector<8x2xf32>,
    } else {
    }
    return
  }
  func.func @transform_0(%arg0: i32, %arg1: i32) -> (i32, i32) {
    %c0_i32 = arith.constant 0 : i32
    %c0_i32_0 = arith.constant 0 : i32
    return %arg0, %c0_i32 : i32, i32
  }
  func.func @transform_1(%arg0: i32, %arg1: i32) -> (i32, i32, i32) {
    %c0_i32 = arith.constant 0 : i32
    %c0_i32_0 = arith.constant 0 : i32
    return %arg1, %arg0, %c0_i32 : i32, i32, i32
  }
  func.func @transform_2(%arg0: i32, %arg1: i32) -> (i32, i32) {
    %c0_i32 = arith.constant 0 : i32
    %c0_i32_0 = arith.constant 0 : i32
    return %c0_i32, %arg0 : i32, i32
  }
}

</mosaic_0001>

<llo_original>
// kernel: _forward.1
$region0: #{_forward.1}
  #allocation0 [shape = 'u32[]', space=smem, size = 0x4, offset = 0x4, fixed_abs, tag = 'smem constant byte address 0x4 - core index']
  #allocation1 [shape = 'u32[72,128]{1,0:T(1,128)}', space=vmem, size = 0x9000, scoped, tag = 'internal scratch']
  %s0 = inlined_call_operand.hbm [shape: f32[2,32], index: 0, kind: input, shape index: {}]
  %s1 = inlined_call_operand.hbm [shape: f32[8,2,32], index: 1, kind: input, shape index: {}]
  %s2 = inlined_call_operand.vmem [shape: f32[8,2], index: 2, kind: output, shape index: {}]
  %s3 = sld [smem:[#allocation0]]
  $region30: #{_forward.1} parent=0
    _
  %s5 = ssub.s32 1, %s3
  %s6 = scalar_select 0, %s5, %s3
  $region1: #{_forward.1} parent=0
    #allocation2 [shape = 'u8[1024]{0}', space=vmem, size = 0x400, scoped, tag = 'input window, operand 0, single buffered']
    #allocation3 [shape = 's32[1]{0}', space=sflag, size = 0x4, scoped, tag = 'scoped memory for _forward.1']
    #allocation4 [shape = 'u8[8192]{0}', space=vmem, size = 0x2000, scoped, tag = 'input window, operand 1, single buffered']
    #allocation5 [shape = 's32[1]{0}', space=sflag, size = 0x4, scoped, tag = 'scoped memory for _forward.1']
    %7 = vsyncpa [#allocation3], 0
    %8 = vsyncpa [#allocation5], 0
    // Predicated region
    $region2: #{_forward.1} parent=1 // pred_check
      _
    $region3: #{_forward.1} parent=1 // pred_check_branch
      %10 = sbr.rel (0) target = $region5
    $region4: #{_forward.1} parent=1 // pred_region
      %12 = vsyncadd [#allocation3], 0
      %s14 = sshll.u32 %s0, 4
      %s15 = int_to_ptr.hbm [resolvable:$true] %s14
      %s16 = sshll.u32 [#allocation2], 4
      %s17 = int_to_ptr.vmem [resolvable:$true] %s16
      %19 = dma.hbm_to_vmem [thread:$0]  %s15, 32, %s17, [#allocation3]
    $region5: #{_forward.1} parent=1 // pred_fallthru
      _
    // Predicated region
    $region6: #{_forward.1} parent=1 // pred_check
      _
    $region7: #{_forward.1} parent=1 // pred_check_branch
      %21 = sbr.rel (0) target = $region9
    $region8: #{_forward.1} parent=1 // pred_region
      %23 = vsyncadd [#allocation5], 0
      %s24 = sshll.u32 %s1, 4
      %s25 = int_to_ptr.hbm [resolvable:$true] %s24
      %s26 = sshll.u32 [#allocation4], 4
      %s27 = int_to_ptr.vmem [resolvable:$true] %s26
      %32 = dma.hbm_to_vmem [thread:$0]  %s25, 256, %s27, [#allocation5], 32, 32, 2
    $region9: #{_forward.1} parent=1 // pred_fallthru
      _
    // Predicated region
    $region10: #{_forward.1} parent=1 // pred_check
      _
    $region11: #{_forward.1} parent=1 // pred_check_branch
      %34 = sbr.rel (0) target = $region13
    $region12: #{_forward.1} parent=1 // pred_region
      %36 = dma.done [#allocation3], 32
    $region13: #{_forward.1} parent=1 // pred_fallthru
      _
    // Predicated region
    $region14: #{_forward.1} parent=1 // pred_check
      _
    $region15: #{_forward.1} parent=1 // pred_check_branch
      %38 = sbr.rel (0) target = $region17
    $region16: #{_forward.1} parent=1 // pred_region
      %40 = dma.done [#allocation5], 256
    $region17: #{_forward.1} parent=1 // pred_fallthru
      _
    %v41 = vld [vmem:[#allocation4] sm:$0x3]
    %v42 = vld [vmem:[#allocation4 + $0x2] sm:$0x3]
    %v43 = vld [vmem:[#allocation4 + $0x4] sm:$0x3]
    %v44 = vld [vmem:[#allocation4 + $0x6] sm:$0x3]
    %v45 = vld [vmem:[#allocation4 + $0x8] sm:$0x3]
    %v46 = vld [vmem:[#allocation4 + $0xa] sm:$0x3]
    %v47 = vld [vmem:[#allocation4 + $0xc] sm:$0x3]
    %v48 = vld [vmem:[#allocation4 + $0xe] sm:$0x3]
    %v49 = vld [vmem:[#allocation2] sm:$0x3]
    %v50 = vmul.f32 %v41, %v49
    %v51 = vmul.f32 %v42, %v49
    %v52 = vmul.f32 %v43, %v49
    %v53 = vmul.f32 %v44, %v49
    %v54 = vmul.f32 %v45, %v49
    %v55 = vmul.f32 %v46, %v49
    %v56 = vmul.f32 %v47, %v49
    %v57 = vmul.f32 %v48, %v49
    %vm58 = vcmask 254976
    %v59 = vsel %vm58, %v50, 0.0
    %60 = vadd.xlane.f32.xlu0 %v59
    %v61 = vpop.xlane.xlu0 %60
    %v62 = vsel %vm58, %v51, 0.0
    %63 = vadd.xlane.f32.xlu0 %v62
    %v64 = vpop.xlane.xlu0 %63
    %v65 = vsel %vm58, %v52, 0.0
    %66 = vadd.xlane.f32.xlu0 %v65
    %v67 = vpop.xlane.xlu0 %66
    %v68 = vsel %vm58, %v53, 0.0
    %69 = vadd.xlane.f32.xlu0 %v68
    %v70 = vpop.xlane.xlu0 %69
    %v71 = vsel %vm58, %v54, 0.0
    %72 = vadd.xlane.f32.xlu0 %v71
    %v73 = vpop.xlane.xlu0 %72
    %v74 = vsel %vm58, %v55, 0.0
    %75 = vadd.xlane.f32.xlu0 %v74
    %v76 = vpop.xlane.xlu0 %75
    %v77 = vsel %vm58, %v56, 0.0
    %78 = vadd.xlane.f32.xlu0 %v77
    %v79 = vpop.xlane.xlu0 %78
    %v80 = vsel %vm58, %v57, 0.0
    %81 = vadd.xlane.f32.xlu0 %v80
    %v82 = vpop.xlane.xlu0 %81
    %s83 = smul.u32 0, 8
    %v92 = vlaneseq
    %v93 = vand.u32 %v92, 127
    %v94 = vperm.slane %v61, %v93
    %v95 = vperm.slane %v64, %v93
    %v96 = vperm.slane %v67, %v93
    %v97 = vperm.slane %v70, %v93
    %v98 = vperm.slane %v73, %v93
    %v99 = vperm.slane %v76, %v93
    %v100 = vperm.slane %v79, %v93
    %v101 = vperm.slane %v82, %v93
    %vm102 = vcmask 1041409
    %v103 = vsel %vm102, %v95, %v94
    %vm104 = vcmask 1042434
    %v105 = vsel %vm104, %v96, %v103
    %vm106 = vcmask 1043459
    %v107 = vsel %vm106, %v97, %v105
    %vm108 = vcmask 1044484
    %v109 = vsel %vm108, %v98, %v107
    %vm110 = vcmask 1045509
    %v111 = vsel %vm110, %v99, %v109
    %vm112 = vcmask 1046534
    %v113 = vsel %vm112, %v100, %v111
    %vm114 = vcmask 1047559
    %v115 = vsel %vm114, %v101, %v113
    %s117 = scalar_lea.vmem %s2, %s83
    %vm118 = vcmask 15360
    %119 = vst.msk [vmem:[%s117] sm:$0xff] %vm118, %v115
    %p120 = scmp.eq.s32.totalorder 0, 0
    // Predicated region
    $region18: #{_forward.1} parent=1 // pred_check
      %p121 = pneg %p120
    $region19: #{_forward.1} parent=1 // pred_check_branch
      %123 = sbr.rel (%p121) target = $region21
    $region20: #{_forward.1} parent=1 // pred_region
      %v124 = vld [vmem:[%s2] sm:$0xff]
      %v125 = vsel %vm118, %v124, -inf
      %v126 = vrot.slane %v125, 4
      %v127 = vmax.f32 %v125, %v126
      %v128 = vrot.slane %v127, 2
      %v129 = vmax.f32 %v127, %v128
      %v130 = vrot.slane %v129, 1
      %v131 = vmax.f32 %v129, %v130
      %v132 = vsub.f32 %v124, %v131
      %v133 = vmul.f32 %v132, 1.442695
      %v134 = vpow.pop %v133
      %v135 = vsel %vm118, %v134, 0.0
      %v136 = vrot.slane %v135, 4
      %v137 = vadd.f32 %v135, %v136
      %v138 = vrot.slane %v137, 2
      %v139 = vadd.f32 %v137, %v138
      %v140 = vrot.slane %v139, 1
      %v141 = vadd.f32 %v139, %v140
      %v142 = vrcp.pop %v141
      %v143 = vmul.f32 %v141, %v142
      %v144 = vsub.f32 1.0, %v143
      %v145 = vmul.f32 %v142, %v144
      %v146 = vadd.f32 %v142, %v145
      %vm147 = vweird.f32 %v141
      %vm148 = vweird.f32 %v142
      %vm149 = vmor %vm147, %vm148
      %v150 = vsel %vm149, %v142, %v146
      %v151 = vand.u32 2147483647, %v141
      %vm152 = vcmp.eq.f32.partialorder %v151, 8.507059e+37
      %v153 = vand.u32 %v141, 2147483648
      %v154 = vor.u32 1.1754944e-38, %v153
      %v155 = vsel %vm152, %v154, %v150
      %v156 = vmul.f32 %v134, %v155
      %157 = vst.msk [vmem:[%s2] sm:$0xff] %vm118, %v156
    $region21: #{_forward.1} parent=1 // pred_fallthru
      _
    // Predicated region
    $region22: #{_forward.1} parent=1 // pred_check
      _
    $region23: #{_forward.1} parent=1 // pred_check_branch
      %159 = sbr.rel (0) target = $region25
    $region24: #{_forward.1} parent=1 // pred_region
      _
    $region25: #{_forward.1} parent=1 // pred_fallthru
      _
    // Predicated region
    $region26: #{_forward.1} parent=1 // pred_check
      _
    $region27: #{_forward.1} parent=1 // pred_check_branch
      %161 = sbr.rel (0) target = $region29
    $region28: #{_forward.1} parent=1 // pred_region
      _
    $region29: #{_forward.1} parent=1 // pred_fallthru
      _
    %162 = vsyncpa [#allocation3], 1
    %163 = vsyncpa [#allocation5], 1

</llo_original>
